<compile_context>
chip_gen: v6e
topology: v6e:2x2x1
jax: 0.10.0
libtpu: 0.0.40
codegen_flags: <defaults>
</compile_context>

<pallas_src>
import math

import jax
import jax.numpy as jnp
from jax.experimental import pallas as pl
from jax.experimental.pallas import tpu as pltpu


def _round_up(x, m):
    return (x + m - 1) // m * m


def _cdiv(a, b):
    return (a + b - 1) // b


def _tpu_vmem_capacity_bytes():
    """Per-core VMEM capacity; conservative fallback if the query is unavailable."""
    try:
        cap = int(pltpu.get_tpu_info().vmem_capacity_bytes)
        if cap >= (16 << 20):
            return cap
    except Exception:
        pass
    return 64 << 20  # v7x-sized fallback: safe on every generation


def prepare_weight(weight, compute_dtype=jnp.bfloat16):
    """One-time parameter prep (hoisted out of the per-call forward).

    Casting W to the MXU compute dtype here avoids an extra full
    read-f32 / write-bf16 / re-read pass over the weight on every forward.
    """
    return jnp.asarray(weight, dtype=compute_dtype)


# ---------------------------------------------------------------------------
# Kernels
# ---------------------------------------------------------------------------

def _logits_kernel_single(x_ref, w_ref, b_ref, o_ref):
    """Whole contraction in one grid step: logits tile = x_tile @ W + bias."""
    # TODO(synk): if the wrapped model applies (im_mean, im_std) normalization,
    # fuse it here as a VPU elementwise op on x before the cast/dot.
    x = x_ref[...].astype(w_ref.dtype)  # in-kernel cast, hidden under the DMA
    acc = jnp.dot(x, w_ref[...], preferred_element_type=jnp.float32)
    o_ref[...] = acc + b_ref[...]


def _logits_kernel_ktiled(x_ref, w_ref, b_ref, o_ref):
    """K-tiled variant for large D: accumulate partial matmuls directly into
    the resident f32 output block (no scratch accumulator)."""
    k = pl.program_id(1)

    @pl.when(k == 0)
    def _():
        o_ref[...] = jnp.zeros_like(o_ref)

    x = x_ref[...].astype(w_ref.dtype)
    o_ref[...] += jnp.dot(x, w_ref[...], preferred_element_type=jnp.float32)

    @pl.when(k == pl.num_programs(1) - 1)
    def _():
        o_ref[...] += b_ref[...]


# ---------------------------------------------------------------------------
# Wrapper
# ---------------------------------------------------------------------------

def general_torch_model_forward(
    image,
    weight,
    bias,
    *,
    compute_dtype=jnp.bfloat16,
    tk=2048,
    force_k_tiling=False,
    single_step_byte_budget=None,
):
    """Forward pass: logits = flatten(image) @ weight + bias.

    image : [B, C, H, W]  (NCHW, matching the PyTorch module's input)
    weight: [D, n_class] with D = C*H*W  (ideally pre-cast via prepare_weight)
    bias  : [n_class]
    returns logits [B, n_class] in float32
    """
    B = image.shape[0]
    D = weight.shape[0]
    n_class = weight.shape[1]
    assert math.prod(image.shape[1:]) == D, "image features must match weight rows"

    # Glue reshape only; x keeps its original dtype (no extra HBM pass).
    x = image.reshape(B, D)
    # Weight should already be pre-cast by prepare_weight(); only cast if not.
    w = weight if weight.dtype == compute_dtype else weight.astype(compute_dtype)
    b2 = bias.astype(jnp.float32).reshape(1, n_class)

    x_isz = jnp.dtype(x.dtype).itemsize
    w_isz = jnp.dtype(w.dtype).itemsize

    # Per-generation VMEM budgets (v5e/v6e 128 MiB, v7x 64 MiB per core).
    vmem_cap = _tpu_vmem_capacity_bytes()
    if single_step_byte_budget is None:
        single_step_byte_budget = min(20 << 20, vmem_cap // 3)
    vmem_limit = int(min(vmem_cap // 2, 48 << 20))

    # Batch tiling: one full-extent batch block when it fits (no padding at
    # all), otherwise balanced tiles of <= 256 rows to minimize batch padding.
    TB_MAX = 256
    if B <= TB_MAX:
        tb, B_pad, n_b = B, B, 1
    else:
        B8 = _round_up(B, 8)
        n_b = _cdiv(B8, TB_MAX)
        tb = _round_up(_cdiv(B8, n_b), 8)
        B_pad = n_b * tb

    # Single-step VMEM estimate: double-buffered x tile + (conservatively
    # double-counted) resident weight + f32 output tile + bias.
    single_step_bytes = (
        2 * (tb * D * x_isz + D * n_class * w_isz)
        + 2 * tb * n_class * 4
        + 2 * n_class * 4
    )
    use_single = (not force_k_tiling) and single_step_bytes <= single_step_byte_budget

    if use_single:
        # One grid step per batch tile; whole contraction per step.
        if B_pad != B:
            x = jnp.pad(x, ((0, B_pad - B), (0, 0)))
        out = pl.pallas_call(
            _logits_kernel_single,
            out_shape=jax.ShapeDtypeStruct((B_pad, n_class), jnp.float32),
            grid_spec=pltpu.PrefetchScalarGridSpec(
                num_scalar_prefetch=0,
                grid=(n_b,),
                in_specs=[
                    pl.BlockSpec((tb, D), lambda i: (i, 0)),        # x batch tile
                    pl.BlockSpec((D, n_class), lambda i: (0, 0)),   # resident W
                    pl.BlockSpec((1, n_class), lambda i: (0, 0)),   # bias
                ],
                out_specs=pl.BlockSpec((tb, n_class), lambda i: (i, 0)),
            ),
            compiler_params=pltpu.CompilerParams(
                dimension_semantics=("parallel",),
                vmem_limit_bytes=vmem_limit,
            ),
        )(x, w, b2)
    else:
        # Large-D fallback: K-tiled reduction (reduction axis last in grid).
        # Shrink tk to fit the VMEM budget (double-buffered x and W K-slabs).
        per_k_col = 2 * (tb * x_isz + n_class * w_isz)
        tk_fit = (single_step_byte_budget - 2 * tb * n_class * 4) // per_k_col
        tk_fit = max(128, (tk_fit // 128) * 128)
        tk_eff = max(128, min(tk, tk_fit))
        # Balanced K tiles: pad D only to a multiple of 128 and rebalance so
        # the last tile is not mostly zeros.
        D128 = _round_up(D, 128)
        n_k = _cdiv(D128, tk_eff)
        tk_eff = _round_up(_cdiv(D128, n_k), 128)
        D_pad = n_k * tk_eff
        if B_pad != B or D_pad != D:
            x = jnp.pad(x, ((0, B_pad - B), (0, D_pad - D)))
        if D_pad != D:
            # TODO(synk): hoist this weight pad into prepare_weight() when the
            # K-tiled path is hit repeatedly with a fixed tk.
            w = jnp.pad(w, ((0, D_pad - D), (0, 0)))
        out = pl.pallas_call(
            _logits_kernel_ktiled,
            out_shape=jax.ShapeDtypeStruct((B_pad, n_class), jnp.float32),
            grid_spec=pltpu.PrefetchScalarGridSpec(
                num_scalar_prefetch=0,
                grid=(n_b, n_k),
                in_specs=[
                    pl.BlockSpec((tb, tk_eff), lambda i, k: (i, k)),
                    pl.BlockSpec((tk_eff, n_class), lambda i, k: (k, 0)),
                    pl.BlockSpec((1, n_class), lambda i, k: (0, 0)),
                ],
                out_specs=pl.BlockSpec((tb, n_class), lambda i, k: (i, 0)),
            ),
            compiler_params=pltpu.CompilerParams(
                dimension_semantics=("parallel", "arbitrary"),
                vmem_limit_bytes=vmem_limit,
            ),
        )(x, w, b2)

    # Bias is already fused in the kernel; only strip batch padding (if any).
    return out if B_pad == B else out[:B]


def predict_label(image, weight, bias):
    """Equivalent of GeneralTorchModel.predict_label: argmax over class axis."""
    logits = general_torch_model_forward(image, weight, bias)
    return jnp.argmax(logits, axis=1)


if __name__ == "__main__":
    # Small shapes consistent with the module's intent (image classifier, 10 classes).
    B, C, H, W = 2, 4, 16, 16
    n_class = 10
    D = C * H * W  # 1024

    key = jax.random.PRNGKey(0)
    k_img, k_w, k_b = jax.random.split(key, 3)

    image = jax.random.normal(k_img, (B, C, H, W), dtype=jnp.float32)
    # Deterministic synthetic "model" parameters (not a checkpoint load).
    weight = jax.random.normal(k_w, (D, n_class), dtype=jnp.float32) * 0.02
    bias = jax.random.normal(k_b, (n_class,), dtype=jnp.float32) * 0.1

    # One-time hoisted parameter prep (weight cast happens once, not per call).
    w_prep = prepare_weight(weight)

    # References: exact f32 forward and the bf16-input / f32-accumulate forward.
    x_flat = image.reshape(B, D)
    ref_f32 = x_flat @ weight + bias
    x_bf = x_flat.astype(jnp.bfloat16).astype(jnp.float32)
    w_bf = weight.astype(jnp.bfloat16).astype(jnp.float32)
    ref_bf16 = x_bf @ w_bf + bias

    # Default path at this size: single grid step, no padding, fused bias.
    logits = jax.block_until_ready(general_torch_model_forward(image, w_prep, bias))
    assert logits.shape == (B, n_class)
    assert jnp.allclose(logits, ref_bf16, atol=2e-3, rtol=2e-3), "mismatch (bf16 ref, single-step)"
    assert jnp.allclose(logits, ref_f32, atol=5e-2, rtol=5e-2), "mismatch (f32 ref, single-step)"

    # Exercise the K-tiled fallback too (used automatically when D is large).
    logits_kt = jax.block_until_ready(
        general_torch_model_forward(image, w_prep, bias, force_k_tiling=True, tk=512)
    )
    assert jnp.allclose(logits_kt, ref_bf16, atol=2e-3, rtol=2e-3), "mismatch (bf16 ref, k-tiled)"

    labels = jax.block_until_ready(predict_label(image, w_prep, bias))
    assert labels.shape == (B,)

    print("KERNEL_OK")
</pallas_src>

<mosaic_0001>
module attributes {stable_mosaic.version = 11 : i64} {
  func.func @_logits_kernel_single(%arg0: i32, %arg1: memref<2x1024xf32, #tpu.memory_space<vmem>>, %arg2: memref<1024x10xbf16, #tpu.memory_space<vmem>>, %arg3: memref<1x10xf32, #tpu.memory_space<vmem>>, %arg4: memref<2x10xf32, #tpu.memory_space<vmem>>) attributes {dimension_semantics = [#tpu.dimension_semantics<parallel>], iteration_bounds = array<i64: 1>, scalar_prefetch = 0 : i64, scratch_operands = 0 : i64, tpu.core_type = #tpu.core_type<tc>, window_params = [{transform_indices = @transform_0, window_bounds = array<i64: 2, 1024>}, {pipeline_mode = #tpu.pipeline_mode<synchronous>, transform_indices = @transform_1, window_bounds = array<i64: 1024, 10>}, {pipeline_mode = #tpu.pipeline_mode<synchronous>, transform_indices = @transform_2, window_bounds = array<i64: 1, 10>}, {transform_indices = @transform_3, window_bounds = array<i64: 2, 10>}]} {
    %c0 = arith.constant 0 : index
    %c0_0 = arith.constant 0 : index
    %0 = vector.load %arg1[%c0, %c0_0] : memref<2x1024xf32, #tpu.memory_space<vmem>>, vector<2x1024xf32>
    %1 = arith.truncf %0 : vector<2x1024xf32> to vector<2x1024xbf16>
    %c0_1 = arith.constant 0 : index
    %c0_2 = arith.constant 0 : index
    %2 = vector.load %arg2[%c0_1, %c0_2] : memref<1024x10xbf16, #tpu.memory_space<vmem>>, vector<1024x10xbf16>
    %cst = arith.constant dense<0.000000e+00> : vector<2x10xf32>
    %3 = tpu.matmul %1, %2, %cst {dimension_numbers = #tpu.dot_dimension_numbers<[1], [0], [0], [1], [0, 0, 1, 1], [], []>} : vector<2x1024xbf16>, vector<1024x10xbf16>, vector<2x10xf32> -> vector<2x10xf32>
    %c0_3 = arith.constant 0 : index
    %c0_4 = arith.constant 0 : index
    %4 = vector.load %arg3[%c0_3, %c0_4] : memref<1x10xf32, #tpu.memory_space<vmem>>, vector<1x10xf32>
    %5 = vector.broadcast %4 : vector<1x10xf32> to vector<2x10xf32>
    %6 = arith.addf %3, %5 : vector<2x10xf32>
    %c0_5 = arith.constant 0 : index
    %c0_6 = arith.constant 0 : index
    %7 = vector.load %arg4[%c0_5, %c0_6] : memref<2x10xf32, #tpu.memory_space<vmem>>, vector<2x10xf32>
    tpu.vector_store %arg4[%c0_5, %c0_6], %6 {strides = array<i32>} : memref<2x10xf32, #tpu.memory_space<vmem>>, vector<2x10xf32>,
    return
  }
  func.func @transform_0(%arg0: i32) -> (i32, i32) {
    %c0_i32 = arith.constant 0 : i32
    %c0_i32_0 = arith.constant 0 : i32
    return %arg0, %c0_i32 : i32, i32
  }
  func.func @transform_1(%arg0: i32) -> (i32, i32) {
    %c0_i32 = arith.constant 0 : i32
    %c0_i32_0 = arith.constant 0 : i32
    %c0_i32_1 = arith.constant 0 : i32
    return %c0_i32, %c0_i32_0 : i32, i32
  }
  func.func @transform_2(%arg0: i32) -> (i32, i32) {
    %c0_i32 = arith.constant 0 : i32
    %c0_i32_0 = arith.constant 0 : i32
    %c0_i32_1 = arith.constant 0 : i32
    return %c0_i32, %c0_i32_0 : i32, i32
  }
  func.func @transform_3(%arg0: i32) -> (i32, i32) {
    %c0_i32 = arith.constant 0 : i32
    %c0_i32_0 = arith.constant 0 : i32
    return %arg0, %c0_i32 : i32, i32
  }
}

</mosaic_0001>

<llo_original>
// kernel: tpu_custom_call.1
$region0: #{tpu_custom_call.1}
  #allocation0 [shape = 'u32[]', space=smem, size = 0x4, offset = 0x4, fixed_abs, tag = 'smem constant byte address 0x4 - core index']
  #allocation1 [shape = 'u32[144,128]{1,0:T(1,128)}', space=vmem, size = 0x12000, scoped, tag = 'internal scratch']
  %s0 = inlined_call_operand.vmem [shape: f32[2,1024], index: 0, kind: input, shape index: {}]
  %s1 = inlined_call_operand.vmem [shape: bf16[1024,10], index: 1, kind: input, shape index: {}]
  %s2 = inlined_call_operand.vmem [shape: f32[1,10], index: 2, kind: input, shape index: {}]
  %s3 = inlined_call_operand.hbm [shape: f32[2,10], index: 3, kind: output, shape index: {}]
  %s4 = sld [smem:[#allocation0]]
  $region22: #{tpu_custom_call.1} parent=0
    _
  %s6 = ssub.s32 1, %s4
  %s7 = scalar_select 0, %s6, %s4
  $region1: #{tpu_custom_call.1} parent=0
    #allocation2 [shape = 'u8[1024]{0}', space=vmem, size = 0x400, scoped, tag = 'output window, operand 0, single buffered']
    #allocation3 [shape = 's32[1]{0}', space=sflag, size = 0x4, scoped, tag = 'scoped memory for tpu_custom_call.1']
    %8 = vsyncpa [#allocation3], 0
    // Predicated region
    $region2: #{tpu_custom_call.1} parent=1 // pred_check
      _
    $region3: #{tpu_custom_call.1} parent=1 // pred_check_branch
      %10 = sbr.rel (0) target = $region5
    $region4: #{tpu_custom_call.1} parent=1 // pred_region
      _
    $region5: #{tpu_custom_call.1} parent=1 // pred_fallthru
      _
    // Predicated region
    $region6: #{tpu_custom_call.1} parent=1 // pred_check
      _
    $region7: #{tpu_custom_call.1} parent=1 // pred_check_branch
      %12 = sbr.rel (0) target = $region9
    $region8: #{tpu_custom_call.1} parent=1 // pred_region
      _
    $region9: #{tpu_custom_call.1} parent=1 // pred_fallthru
      _
    // Predicated region
    $region10: #{tpu_custom_call.1} parent=1 // pred_check
      _
    $region11: #{tpu_custom_call.1} parent=1 // pred_check_branch
      %14 = sbr.rel (0) target = $region13
    $region12: #{tpu_custom_call.1} parent=1 // pred_region
      _
    $region13: #{tpu_custom_call.1} parent=1 // pred_fallthru
      _
    %v16 = vld [vmem:[%s0] sm:$0xff]
    %v17 = vld [vmem:[%s0 + $0x8] sm:$0xff]
    %v20 = vcombine.high %v16, %v16
    %v22 = vunpack.c.l.s4 1983009808
    %v23 = vunpack.c.0.s8 %v22
    %v24 = vlaneseq
    %v25 = vshrl.u32 %v24, 7
    %v26 = vsub.s32 %v23, %v25
    %v27 = vrot.slane %v16, %v26
    %v29 = vunpack.c.l.s4 1983009808
    %v30 = vunpack.c.0.s8 %v29
    %v31 = vlaneseq
    %v32 = vshrl.u32 %v31, 7
    %v33 = vsub.s32 %v30, %v32
    %v34 = vrot.slane %v20, %v33
    %v35 = vcombine.high %v27, %v27
    %v36 = vcombine.high %v34, %v34
    %v37 = vcombine.high %v17, %v17
    %v39 = vunpack.c.l.s4 1983009808
    %v40 = vunpack.c.0.s8 %v39
    %v41 = vlaneseq
    %v42 = vshrl.u32 %v41, 7
    %v43 = vsub.s32 %v40, %v42
    %v44 = vrot.slane %v17, %v43
    %v46 = vunpack.c.l.s4 1983009808
    %v47 = vunpack.c.0.s8 %v46
    %v48 = vlaneseq
    %v49 = vshrl.u32 %v48, 7
    %v50 = vsub.s32 %v47, %v49
    %v51 = vrot.slane %v37, %v50
    %v52 = vcombine.high %v44, %v44
    %v53 = vcombine.high %v51, %v51
    %v62 = vpack.c.bf16 %v27, %v27
    %v63 = vpack.c.bf16 %v35, %v35
    %v64 = vpack.c.bf16 %v34, %v34
    %v65 = vpack.c.bf16 %v36, %v36
    %v66 = vpack.c.bf16 %v44, %v44
    %v67 = vpack.c.bf16 %v52, %v52
    %v68 = vpack.c.bf16 %v51, %v51
    %v69 = vpack.c.bf16 %v53, %v53
    %v70 = vld [vmem:[%s1] sm:$0xf]
    %v71 = vld [vmem:[%s1 + $0x4] sm:$0xf]
    %v72 = vld [vmem:[%s1 + $0x8] sm:$0xf]
    %v73 = vld [vmem:[%s1 + $0xc] sm:$0xf]
    %v74 = vld [vmem:[%s1 + $0x10] sm:$0xf]
    %v75 = vld [vmem:[%s1 + $0x14] sm:$0xf]
    %v76 = vld [vmem:[%s1 + $0x18] sm:$0xf]
    %v77 = vld [vmem:[%s1 + $0x1c] sm:$0xf]
    %v78 = vld [vmem:[%s1 + $0x20] sm:$0xf]
    %v79 = vld [vmem:[%s1 + $0x24] sm:$0xf]
    %v80 = vld [vmem:[%s1 + $0x28] sm:$0xf]
    %v81 = vld [vmem:[%s1 + $0x2c] sm:$0xf]
    %v82 = vld [vmem:[%s1 + $0x30] sm:$0xf]
    %v83 = vld [vmem:[%s1 + $0x34] sm:$0xf]
    %v84 = vld [vmem:[%s1 + $0x38] sm:$0xf]
    %v85 = vld [vmem:[%s1 + $0x3c] sm:$0xf]
    %v86 = vld [vmem:[%s1 + $0x40] sm:$0xf]
    %v87 = vld [vmem:[%s1 + $0x44] sm:$0xf]
    %v88 = vld [vmem:[%s1 + $0x48] sm:$0xf]
    %v89 = vld [vmem:[%s1 + $0x4c] sm:$0xf]
    %v90 = vld [vmem:[%s1 + $0x50] sm:$0xf]
    %v91 = vld [vmem:[%s1 + $0x54] sm:$0xf]
    %v92 = vld [vmem:[%s1 + $0x58] sm:$0xf]
    %v93 = vld [vmem:[%s1 + $0x5c] sm:$0xf]
    %v94 = vld [vmem:[%s1 + $0x60] sm:$0xf]
    %v95 = vld [vmem:[%s1 + $0x64] sm:$0xf]
    %v96 = vld [vmem:[%s1 + $0x68] sm:$0xf]
    %v97 = vld [vmem:[%s1 + $0x6c] sm:$0xf]
    %v98 = vld [vmem:[%s1 + $0x70] sm:$0xf]
    %v99 = vld [vmem:[%s1 + $0x74] sm:$0xf]
    %v100 = vld [vmem:[%s1 + $0x78] sm:$0xf]
    %v101 = vld [vmem:[%s1 + $0x7c] sm:$0xf]
    %v102 = vld [vmem:[%s1 + $0x80] sm:$0xf]
    %v103 = vld [vmem:[%s1 + $0x84] sm:$0xf]
    %v104 = vld [vmem:[%s1 + $0x88] sm:$0xf]
    %v105 = vld [vmem:[%s1 + $0x8c] sm:$0xf]
    %v106 = vld [vmem:[%s1 + $0x90] sm:$0xf]
    %v107 = vld [vmem:[%s1 + $0x94] sm:$0xf]
    %v108 = vld [vmem:[%s1 + $0x98] sm:$0xf]
    %v109 = vld [vmem:[%s1 + $0x9c] sm:$0xf]
    %v110 = vld [vmem:[%s1 + $0xa0] sm:$0xf]
    %v111 = vld [vmem:[%s1 + $0xa4] sm:$0xf]
    %v112 = vld [vmem:[%s1 + $0xa8] sm:$0xf]
    %v113 = vld [vmem:[%s1 + $0xac] sm:$0xf]
    %v114 = vld [vmem:[%s1 + $0xb0] sm:$0xf]
    %v115 = vld [vmem:[%s1 + $0xb4] sm:$0xf]
    %v116 = vld [vmem:[%s1 + $0xb8] sm:$0xf]
    %v117 = vld [vmem:[%s1 + $0xbc] sm:$0xf]
    %v118 = vld [vmem:[%s1 + $0xc0] sm:$0xf]
    %v119 = vld [vmem:[%s1 + $0xc4] sm:$0xf]
    %v120 = vld [vmem:[%s1 + $0xc8] sm:$0xf]
    %v121 = vld [vmem:[%s1 + $0xcc] sm:$0xf]
    %v122 = vld [vmem:[%s1 + $0xd0] sm:$0xf]
    %v123 = vld [vmem:[%s1 + $0xd4] sm:$0xf]
    %v124 = vld [vmem:[%s1 + $0xd8] sm:$0xf]
    %v125 = vld [vmem:[%s1 + $0xdc] sm:$0xf]
    %v126 = vld [vmem:[%s1 + $0xe0] sm:$0xf]
    %v127 = vld [vmem:[%s1 + $0xe4] sm:$0xf]
    %v128 = vld [vmem:[%s1 + $0xe8] sm:$0xf]
    %v129 = vld [vmem:[%s1 + $0xec] sm:$0xf]
    %v130 = vld [vmem:[%s1 + $0xf0] sm:$0xf]
    %v131 = vld [vmem:[%s1 + $0xf4] sm:$0xf]
    %v132 = vld [vmem:[%s1 + $0xf8] sm:$0xf]
    %v133 = vld [vmem:[%s1 + $0xfc] sm:$0xf]
    %v134 = vld [vmem:[%s1 + $0x100] sm:$0xf]
    %v135 = vld [vmem:[%s1 + $0x104] sm:$0xf]
    %v136 = vld [vmem:[%s1 + $0x108] sm:$0xf]
    %v137 = vld [vmem:[%s1 + $0x10c] sm:$0xf]
    %v138 = vld [vmem:[%s1 + $0x110] sm:$0xf]
    %v139 = vld [vmem:[%s1 + $0x114] sm:$0xf]
    %v140 = vld [vmem:[%s1 + $0x118] sm:$0xf]
    %v141 = vld [vmem:[%s1 + $0x11c] sm:$0xf]
    %v142 = vld [vmem:[%s1 + $0x120] sm:$0xf]
    %v143 = vld [vmem:[%s1 + $0x124] sm:$0xf]
    %v144 = vld [vmem:[%s1 + $0x128] sm:$0xf]
    %v145 = vld [vmem:[%s1 + $0x12c] sm:$0xf]
    %v146 = vld [vmem:[%s1 + $0x130] sm:$0xf]
    %v147 = vld [vmem:[%s1 + $0x134] sm:$0xf]
    %v148 = vld [vmem:[%s1 + $0x138] sm:$0xf]
    %v149 = vld [vmem:[%s1 + $0x13c] sm:$0xf]
    %v150 = vld [vmem:[%s1 + $0x140] sm:$0xf]
    %v151 = vld [vmem:[%s1 + $0x144] sm:$0xf]
    %v152 = vld [vmem:[%s1 + $0x148] sm:$0xf]
    %v153 = vld [vmem:[%s1 + $0x14c] sm:$0xf]
    %v154 = vld [vmem:[%s1 + $0x150] sm:$0xf]
    %v155 = vld [vmem:[%s1 + $0x154] sm:$0xf]
    %v156 = vld [vmem:[%s1 + $0x158] sm:$0xf]
    %v157 = vld [vmem:[%s1 + $0x15c] sm:$0xf]
    %v158 = vld [vmem:[%s1 + $0x160] sm:$0xf]
    %v159 = vld [vmem:[%s1 + $0x164] sm:$0xf]
    %v160 = vld [vmem:[%s1 + $0x168] sm:$0xf]
    %v161 = vld [vmem:[%s1 + $0x16c] sm:$0xf]
    %v162 = vld [vmem:[%s1 + $0x170] sm:$0xf]
    %v163 = vld [vmem:[%s1 + $0x174] sm:$0xf]
    %v164 = vld [vmem:[%s1 + $0x178] sm:$0xf]
    %v165 = vld [vmem:[%s1 + $0x17c] sm:$0xf]
    %v166 = vld [vmem:[%s1 + $0x180] sm:$0xf]
    %v167 = vld [vmem:[%s1 + $0x184] sm:$0xf]
    %v168 = vld [vmem:[%s1 + $0x188] sm:$0xf]
    %v169 = vld [vmem:[%s1 + $0x18c] sm:$0xf]
    %v170 = vld [vmem:[%s1 + $0x190] sm:$0xf]
    %v171 = vld [vmem:[%s1 + $0x194] sm:$0xf]
    %v172 = vld [vmem:[%s1 + $0x198] sm:$0xf]
    %v173 = vld [vmem:[%s1 + $0x19c] sm:$0xf]
    %v174 = vld [vmem:[%s1 + $0x1a0] sm:$0xf]
    %v175 = vld [vmem:[%s1 + $0x1a4] sm:$0xf]
    %v176 = vld [vmem:[%s1 + $0x1a8] sm:$0xf]
    %v177 = vld [vmem:[%s1 + $0x1ac] sm:$0xf]
    %v178 = vld [vmem:[%s1 + $0x1b0] sm:$0xf]
    %v179 = vld [vmem:[%s1 + $0x1b4] sm:$0xf]
    %v180 = vld [vmem:[%s1 + $0x1b8] sm:$0xf]
    %v181 = vld [vmem:[%s1 + $0x1bc] sm:$0xf]
    %v182 = vld [vmem:[%s1 + $0x1c0] sm:$0xf]
    %v183 = vld [vmem:[%s1 + $0x1c4] sm:$0xf]
    %v184 = vld [vmem:[%s1 + $0x1c8] sm:$0xf]
    %v185 = vld [vmem:[%s1 + $0x1cc] sm:$0xf]
    %v186 = vld [vmem:[%s1 + $0x1d0] sm:$0xf]
    %v187 = vld [vmem:[%s1 + $0x1d4] sm:$0xf]
    %v188 = vld [vmem:[%s1 + $0x1d8] sm:$0xf]
    %v189 = vld [vmem:[%s1 + $0x1dc] sm:$0xf]
    %v190 = vld [vmem:[%s1 + $0x1e0] sm:$0xf]
    %v191 = vld [vmem:[%s1 + $0x1e4] sm:$0xf]
    %v192 = vld [vmem:[%s1 + $0x1e8] sm:$0xf]
    %v193 = vld [vmem:[%s1 + $0x1ec] sm:$0xf]
    %v194 = vld [vmem:[%s1 + $0x1f0] sm:$0xf]
    %v195 = vld [vmem:[%s1 + $0x1f4] sm:$0xf]
    %v196 = vld [vmem:[%s1 + $0x1f8] sm:$0xf]
    %v197 = vld [vmem:[%s1 + $0x1fc] sm:$0xf]
    %v198 = vld [vmem:[%s2] sm:$0x1]
    %v200 = vlaneseq
    %v201 = vshrl.u32 %v200, 7
    %v202 = vsub.s32 0, %v201
    %v203 = vrot.slane %v198, %v202
    %v333 = vunpack.c.l.b16 %v70
    %v334 = vunpack.c.l.b16 %v71
    %v335 = vunpack.c.l.b16 %v72
    %v336 = vunpack.c.l.b16 %v73
    %v337 = vunpack.c.l.b16 %v74
    %v338 = vunpack.c.l.b16 %v75
    %v339 = vunpack.c.l.b16 %v76
    %v340 = vunpack.c.l.b16 %v77
    %v341 = vunpack.c.l.b16 %v78
    %v342 = vunpack.c.l.b16 %v79
    %v343 = vunpack.c.l.b16 %v80
    %v344 = vunpack.c.l.b16 %v81
    %v345 = vunpack.c.l.b16 %v82
    %v346 = vunpack.c.l.b16 %v83
    %v347 = vunpack.c.l.b16 %v84
    %v348 = vunpack.c.l.b16 %v85
    %v349 = vunpack.c.l.b16 %v86
    %v350 = vunpack.c.l.b16 %v87
    %v351 = vunpack.c.l.b16 %v88
    %v352 = vunpack.c.l.b16 %v89
    %v353 = vunpack.c.l.b16 %v90
    %v354 = vunpack.c.l.b16 %v91
    %v355 = vunpack.c.l.b16 %v92
    %v356 = vunpack.c.l.b16 %v93
    %v357 = vunpack.c.l.b16 %v94
    %v358 = vunpack.c.l.b16 %v95
    %v359 = vunpack.c.l.b16 %v96
    %v360 = vunpack.c.l.b16 %v97
    %v361 = vunpack.c.l.b16 %v98
    %v362 = vunpack.c.l.b16 %v99
    %v363 = vunpack.c.l.b16 %v100
    %v364 = vunpack.c.l.b16 %v101
    %v365 = vunpack.c.l.b16 %v102
    %v366 = vunpack.c.l.b16 %v103
    %v367 = vunpack.c.l.b16 %v104
    %v368 = vunpack.c.l.b16 %v105
    %v369 = vunpack.c.l.b16 %v106
    %v370 = vunpack.c.l.b16 %v107
    %v371 = vunpack.c.l.b16 %v108
    %v372 = vunpack.c.l.b16 %v109
    %v373 = vunpack.c.l.b16 %v110
    %v374 = vunpack.c.l.b16 %v111
    %v375 = vunpack.c.l.b16 %v112
    %v376 = vunpack.c.l.b16 %v113
    %v377 = vunpack.c.l.b16 %v114
    %v378 = vunpack.c.l.b16 %v115
    %v379 = vunpack.c.l.b16 %v116
    %v380 = vunpack.c.l.b16 %v117
    %v381 = vunpack.c.l.b16 %v118
    %v382 = vunpack.c.l.b16 %v119
    %v383 = vunpack.c.l.b16 %v120
    %v384 = vunpack.c.l.b16 %v121
    %v385 = vunpack.c.l.b16 %v122
    %v386 = vunpack.c.l.b16 %v123
    %v387 = vunpack.c.l.b16 %v124
    %v388 = vunpack.c.l.b16 %v125
    %v389 = vunpack.c.l.b16 %v126
    %v390 = vunpack.c.l.b16 %v127
    %v391 = vunpack.c.l.b16 %v128
    %v392 = vunpack.c.l.b16 %v129
    %v393 = vunpack.c.l.b16 %v130
    %v394 = vunpack.c.l.b16 %v131
    %v395 = vunpack.c.l.b16 %v132
    %v396 = vunpack.c.l.b16 %v133
    %v397 = vunpack.c.l.b16 %v134
    %v398 = vunpack.c.l.b16 %v135
    %v399 = vunpack.c.l.b16 %v136
    %v400 = vunpack.c.l.b16 %v137
    %v401 = vunpack.c.l.b16 %v138
    %v402 = vunpack.c.l.b16 %v139
    %v403 = vunpack.c.l.b16 %v140
    %v404 = vunpack.c.l.b16 %v141
    %v405 = vunpack.c.l.b16 %v142
    %v406 = vunpack.c.l.b16 %v143
    %v407 = vunpack.c.l.b16 %v144
    %v408 = vunpack.c.l.b16 %v145
    %v409 = vunpack.c.l.b16 %v146
    %v410 = vunpack.c.l.b16 %v147
    %v411 = vunpack.c.l.b16 %v148
    %v412 = vunpack.c.l.b16 %v149
    %v413 = vunpack.c.l.b16 %v150
    %v414 = vunpack.c.l.b16 %v151
    %v415 = vunpack.c.l.b16 %v152
    %v416 = vunpack.c.l.b16 %v153
    %v417 = vunpack.c.l.b16 %v154
    %v418 = vunpack.c.l.b16 %v155
    %v419 = vunpack.c.l.b16 %v156
    %v420 = vunpack.c.l.b16 %v157
    %v421 = vunpack.c.l.b16 %v158
    %v422 = vunpack.c.l.b16 %v159
    %v423 = vunpack.c.l.b16 %v160
    %v424 = vunpack.c.l.b16 %v161
    %v425 = vunpack.c.l.b16 %v162
    %v426 = vunpack.c.l.b16 %v163
    %v427 = vunpack.c.l.b16 %v164
    %v428 = vunpack.c.l.b16 %v165
    %v429 = vunpack.c.l.b16 %v166
    %v430 = vunpack.c.l.b16 %v167
    %v431 = vunpack.c.l.b16 %v168
    %v432 = vunpack.c.l.b16 %v169
    %v433 = vunpack.c.l.b16 %v170
    %v434 = vunpack.c.l.b16 %v171
    %v435 = vunpack.c.l.b16 %v172
    %v436 = vunpack.c.l.b16 %v173
    %v437 = vunpack.c.l.b16 %v174
    %v438 = vunpack.c.l.b16 %v175
    %v439 = vunpack.c.l.b16 %v176
    %v440 = vunpack.c.l.b16 %v177
    %v441 = vunpack.c.l.b16 %v178
    %v442 = vunpack.c.l.b16 %v179
    %v443 = vunpack.c.l.b16 %v180
    %v444 = vunpack.c.l.b16 %v181
    %v445 = vunpack.c.l.b16 %v182
    %v446 = vunpack.c.l.b16 %v183
    %v447 = vunpack.c.l.b16 %v184
    %v448 = vunpack.c.l.b16 %v185
    %v449 = vunpack.c.l.b16 %v186
    %v450 = vunpack.c.l.b16 %v187
    %v451 = vunpack.c.l.b16 %v188
    %v452 = vunpack.c.l.b16 %v189
    %v453 = vunpack.c.l.b16 %v190
    %v454 = vunpack.c.l.b16 %v191
    %v455 = vunpack.c.l.b16 %v192
    %v456 = vunpack.c.l.b16 %v193
    %v457 = vunpack.c.l.b16 %v194
    %v458 = vunpack.c.l.b16 %v195
    %v459 = vunpack.c.l.b16 %v196
    %v460 = vunpack.c.l.b16 %v197
    %v461 = vpack.c.b16 %v334, %v333
    %v462 = vpack.c.b16 %v336, %v335
    %v463 = vpack.c.b16 %v338, %v337
    %v464 = vpack.c.b16 %v340, %v339
    %v465 = vpack.c.b16 %v342, %v341
    %v466 = vpack.c.b16 %v344, %v343
    %v467 = vpack.c.b16 %v346, %v345
    %v468 = vpack.c.b16 %v348, %v347
    %v469 = vpack.c.b16 %v350, %v349
    %v470 = vpack.c.b16 %v352, %v351
    %v471 = vpack.c.b16 %v354, %v353
    %v472 = vpack.c.b16 %v356, %v355
    %v473 = vpack.c.b16 %v358, %v357
    %v474 = vpack.c.b16 %v360, %v359
    %v475 = vpack.c.b16 %v362, %v361
    %v476 = vpack.c.b16 %v364, %v363
    %v477 = vpack.c.b16 %v366, %v365
    %v478 = vpack.c.b16 %v368, %v367
    %v479 = vpack.c.b16 %v370, %v369
    %v480 = vpack.c.b16 %v372, %v371
    %v481 = vpack.c.b16 %v374, %v373
    %v482 = vpack.c.b16 %v376, %v375
    %v483 = vpack.c.b16 %v378, %v377
    %v484 = vpack.c.b16 %v380, %v379
    %v485 = vpack.c.b16 %v382, %v381
    %v486 = vpack.c.b16 %v384, %v383
    %v487 = vpack.c.b16 %v386, %v385
    %v488 = vpack.c.b16 %v388, %v387
    %v489 = vpack.c.b16 %v390, %v389
    %v490 = vpack.c.b16 %v392, %v391
    %v491 = vpack.c.b16 %v394, %v393
    %v492 = vpack.c.b16 %v396, %v395
    %v493 = vpack.c.b16 %v398, %v397
    %v494 = vpack.c.b16 %v400, %v399
    %v495 = vpack.c.b16 %v402, %v401
    %v496 = vpack.c.b16 %v404, %v403
    %v497 = vpack.c.b16 %v406, %v405
    %v498 = vpack.c.b16 %v408, %v407
    %v499 = vpack.c.b16 %v410, %v409
    %v500 = vpack.c.b16 %v412, %v411
    %v501 = vpack.c.b16 %v414, %v413
    %v502 = vpack.c.b16 %v416, %v415
    %v503 = vpack.c.b16 %v418, %v417
    %v504 = vpack.c.b16 %v420, %v419
    %v505 = vpack.c.b16 %v422, %v421
    %v506 = vpack.c.b16 %v424, %v423
    %v507 = vpack.c.b16 %v426, %v425
    %v508 = vpack.c.b16 %v428, %v427
    %v509 = vpack.c.b16 %v430, %v429
    %v510 = vpack.c.b16 %v432, %v431
    %v511 = vpack.c.b16 %v434, %v433
    %v512 = vpack.c.b16 %v436, %v435
    %v513 = vpack.c.b16 %v438, %v437
    %v514 = vpack.c.b16 %v440, %v439
    %v515 = vpack.c.b16 %v442, %v441
    %v516 = vpack.c.b16 %v444, %v443
    %v517 = vpack.c.b16 %v446, %v445
    %v518 = vpack.c.b16 %v448, %v447
    %v519 = vpack.c.b16 %v450, %v449
    %v520 = vpack.c.b16 %v452, %v451
    %v521 = vpack.c.b16 %v454, %v453
    %v522 = vpack.c.b16 %v456, %v455
    %v523 = vpack.c.b16 %v458, %v457
    %v524 = vpack.c.b16 %v460, %v459
    %589 = vmatprep.subr.bf16.mxu0 0
    %590 = vmatpush1.bf16.msra.mxu0 %v468
    %591 = vmatprep.subr.bf16.mxu0 0
    %592 = vmatpush1.bf16.msra.mxu0 %v467
    %593 = vmatprep.subr.bf16.mxu0 0
    %594 = vmatpush1.bf16.msra.mxu0 %v466
    %595 = vmatprep.subr.bf16.mxu0 0
    %596 = vmatpush1.bf16.msra.mxu0 %v465
    %597 = vmatprep.subr.bf16.mxu0 0
    %598 = vmatpush1.bf16.msra.mxu0 %v464
    %599 = vmatprep.subr.bf16.mxu0 0
    %600 = vmatpush1.bf16.msra.mxu0 %v463
    %601 = vmatprep.subr.bf16.mxu0 0
    %602 = vmatpush1.bf16.msra.mxu0 %v462
    %603 = vmatprep.subr.bf16.mxu0 0
    %604 = vmatpush1.bf16.msra.mxu0 %v461
    %605 = vmatprep.subr.bf16.mxu0 0
    %606 = vmatpush2.bf16.msra.mxu0 %v476
    %607 = vmatprep.subr.bf16.mxu0 0
    %608 = vmatpush2.bf16.msra.mxu0 %v475
    %609 = vmatprep.subr.bf16.mxu0 0
    %610 = vmatpush2.bf16.msra.mxu0 %v474
    %611 = vmatprep.subr.bf16.mxu0 0
    %612 = vmatpush2.bf16.msra.mxu0 %v473
    %613 = vmatprep.subr.bf16.mxu0 0
    %614 = vmatpush2.bf16.msra.mxu0 %v472
    %615 = vmatprep.subr.bf16.mxu0 0
    %616 = vmatpush2.bf16.msra.mxu0 %v471
    %617 = vmatprep.subr.bf16.mxu0 0
    %618 = vmatpush2.bf16.msra.mxu0 %v470
    %619 = vmatprep.subr.bf16.mxu0 0
    %620 = vmatpush2.bf16.msra.mxu0 %v469
    %621 = vmatprep.mubr.bf16.mxu0 %v63
    %622 = vmatmul.mubr.bf16.gmra.mxu0 %v62
    %v623 = vpop.f32.mrf.mxu0
    %v624 = vadd.f32 %v203, %v623
    %v625 = vpop.f32.mrf.mxu0
    %v626 = vpop.f32.mrf.mxu0
    %v627 = vpop.f32.mrf.mxu0
    %628 = vdwg.mxu0
    %629 = vmatprep.subr.bf16.mxu0 0
    %630 = vmatpush1.bf16.msra.mxu0 %v484
    %631 = vmatprep.subr.bf16.mxu0 0
    %632 = vmatpush1.bf16.msra.mxu0 %v483
    %633 = vmatprep.subr.bf16.mxu0 0
    %634 = vmatpush1.bf16.msra.mxu0 %v482
    %635 = vmatprep.subr.bf16.mxu0 0
    %636 = vmatpush1.bf16.msra.mxu0 %v481
    %637 = vmatprep.subr.bf16.mxu0 0
    %638 = vmatpush1.bf16.msra.mxu0 %v480
    %639 = vmatprep.subr.bf16.mxu0 0
    %640 = vmatpush1.bf16.msra.mxu0 %v479
    %641 = vmatprep.subr.bf16.mxu0 0
    %642 = vmatpush1.bf16.msra.mxu0 %v478
    %643 = vmatprep.subr.bf16.mxu0 0
    %644 = vmatpush1.bf16.msra.mxu0 %v477
    %645 = vmatprep.subr.bf16.mxu0 0
    %646 = vmatpush2.bf16.msra.mxu0 %v492
    %647 = vmatprep.subr.bf16.mxu0 0
    %648 = vmatpush2.bf16.msra.mxu0 %v491
    %649 = vmatprep.subr.bf16.mxu0 0
    %650 = vmatpush2.bf16.msra.mxu0 %v490
    %651 = vmatprep.subr.bf16.mxu0 0
    %652 = vmatpush2.bf16.msra.mxu0 %v489
    %653 = vmatprep.subr.bf16.mxu0 0
    %654 = vmatpush2.bf16.msra.mxu0 %v488
    %655 = vmatprep.subr.bf16.mxu0 0
    %656 = vmatpush2.bf16.msra.mxu0 %v487
    %657 = vmatprep.subr.bf16.mxu0 0
    %658 = vmatpush2.bf16.msra.mxu0 %v486
    %659 = vmatprep.subr.bf16.mxu0 0
    %660 = vmatpush2.bf16.msra.mxu0 %v485
    %661 = vmatprep.mubr.bf16.mxu0 %v65
    %662 = vmatmul.mubr.bf16.gmra.mxu0 %v64
    %v663 = vpop.f32.mrf.mxu0
    %v664 = vadd.f32 %v624, %v663
    %v665 = vpop.f32.mrf.mxu0
    %v666 = vpop.f32.mrf.mxu0
    %v667 = vpop.f32.mrf.mxu0
    %668 = vdwg.mxu0
    %669 = vmatprep.subr.bf16.mxu0 0
    %670 = vmatpush1.bf16.msra.mxu0 %v500
    %671 = vmatprep.subr.bf16.mxu0 0
    %672 = vmatpush1.bf16.msra.mxu0 %v499
    %673 = vmatprep.subr.bf16.mxu0 0
    %674 = vmatpush1.bf16.msra.mxu0 %v498
    %675 = vmatprep.subr.bf16.mxu0 0
    %676 = vmatpush1.bf16.msra.mxu0 %v497
    %677 = vmatprep.subr.bf16.mxu0 0
    %678 = vmatpush1.bf16.msra.mxu0 %v496
    %679 = vmatprep.subr.bf16.mxu0 0
    %680 = vmatpush1.bf16.msra.mxu0 %v495
    %681 = vmatprep.subr.bf16.mxu0 0
    %682 = vmatpush1.bf16.msra.mxu0 %v494
    %683 = vmatprep.subr.bf16.mxu0 0
    %684 = vmatpush1.bf16.msra.mxu0 %v493
    %685 = vmatprep.subr.bf16.mxu0 0
    %686 = vmatpush2.bf16.msra.mxu0 %v508
    %687 = vmatprep.subr.bf16.mxu0 0
    %688 = vmatpush2.bf16.msra.mxu0 %v507
    %689 = vmatprep.subr.bf16.mxu0 0
    %690 = vmatpush2.bf16.msra.mxu0 %v506
    %691 = vmatprep.subr.bf16.mxu0 0
    %692 = vmatpush2.bf16.msra.mxu0 %v505
    %693 = vmatprep.subr.bf16.mxu0 0
    %694 = vmatpush2.bf16.msra.mxu0 %v504
    %695 = vmatprep.subr.bf16.mxu0 0
    %696 = vmatpush2.bf16.msra.mxu0 %v503
    %697 = vmatprep.subr.bf16.mxu0 0
    %698 = vmatpush2.bf16.msra.mxu0 %v502
    %699 = vmatprep.subr.bf16.mxu0 0
    %700 = vmatpush2.bf16.msra.mxu0 %v501
    %701 = vmatprep.mubr.bf16.mxu0 %v67
    %702 = vmatmul.mubr.bf16.gmra.mxu0 %v66
    %v703 = vpop.f32.mrf.mxu0
    %v704 = vadd.f32 %v664, %v703
    %v705 = vpop.f32.mrf.mxu0
    %v706 = vpop.f32.mrf.mxu0
    %v707 = vpop.f32.mrf.mxu0
    %708 = vdwg.mxu0
    %709 = vmatprep.subr.bf16.mxu0 0
    %710 = vmatpush1.bf16.msra.mxu0 %v516
    %711 = vmatprep.subr.bf16.mxu0 0
    %712 = vmatpush1.bf16.msra.mxu0 %v515
    %713 = vmatprep.subr.bf16.mxu0 0
    %714 = vmatpush1.bf16.msra.mxu0 %v514
    %715 = vmatprep.subr.bf16.mxu0 0
    %716 = vmatpush1.bf16.msra.mxu0 %v513
    %717 = vmatprep.subr.bf16.mxu0 0
    %718 = vmatpush1.bf16.msra.mxu0 %v512
    %719 = vmatprep.subr.bf16.mxu0 0
    %720 = vmatpush1.bf16.msra.mxu0 %v511
    %721 = vmatprep.subr.bf16.mxu0 0
    %722 = vmatpush1.bf16.msra.mxu0 %v510
    %723 = vmatprep.subr.bf16.mxu0 0
    %724 = vmatpush1.bf16.msra.mxu0 %v509
    %725 = vmatprep.subr.bf16.mxu0 0
    %726 = vmatpush2.bf16.msra.mxu0 %v524
    %727 = vmatprep.subr.bf16.mxu0 0
    %728 = vmatpush2.bf16.msra.mxu0 %v523
    %729 = vmatprep.subr.bf16.mxu0 0
    %730 = vmatpush2.bf16.msra.mxu0 %v522
    %731 = vmatprep.subr.bf16.mxu0 0
    %732 = vmatpush2.bf16.msra.mxu0 %v521
    %733 = vmatprep.subr.bf16.mxu0 0
    %734 = vmatpush2.bf16.msra.mxu0 %v520
    %735 = vmatprep.subr.bf16.mxu0 0
    %736 = vmatpush2.bf16.msra.mxu0 %v519
    %737 = vmatprep.subr.bf16.mxu0 0
    %738 = vmatpush2.bf16.msra.mxu0 %v518
    %739 = vmatprep.subr.bf16.mxu0 0
    %740 = vmatpush2.bf16.msra.mxu0 %v517
    %741 = vmatprep.mubr.bf16.mxu0 %v69
    %742 = vmatmul.mubr.bf16.gmra.mxu0 %v68
    %v743 = vpop.f32.mrf.mxu0
    %v744 = vadd.f32 %v704, %v743
    %v745 = vpop.f32.mrf.mxu0
    %v746 = vpop.f32.mrf.mxu0
    %v747 = vpop.f32.mrf.mxu0
    %748 = vdwg.mxu0
    %vm749 = vcmask 74752
    %750 = vst.msk [vmem:[#allocation2] sm:$0x3] %vm749, %v744
    // Predicated region
    $region14: #{tpu_custom_call.1} parent=1 // pred_check
      _
    $region15: #{tpu_custom_call.1} parent=1 // pred_check_branch
      %752 = sbr.rel (0) target = $region17
    $region16: #{tpu_custom_call.1} parent=1 // pred_region
      %s754 = ssub.s32 32, 32
      %755 = vsyncadd [#allocation3], %s754
      %s757 = sshll.u32 [#allocation2], 4
      %s758 = int_to_ptr.vmem [resolvable:$true] %s757
      %760 = dma.vmem_to_hbm [thread:$0]  %s758, 32, %s3, [#allocation3]
    $region17: #{tpu_custom_call.1} parent=1 // pred_fallthru
      _
    // Predicated region
    $region18: #{tpu_custom_call.1} parent=1 // pred_check
      _
    $region19: #{tpu_custom_call.1} parent=1 // pred_check_branch
      %762 = sbr.rel (0) target = $region21
    $region20: #{tpu_custom_call.1} parent=1 // pred_region
      %763 = dma.done [#allocation3], 32
    $region21: #{tpu_custom_call.1} parent=1 // pred_fallthru
      _
    %764 = vsyncpa [#allocation3], 1

</llo_original>
